<compile_context>
chip_gen: v5e
topology: v5e:2x2
jax: 0.10.0
libtpu: 0.0.40
codegen_flags: <defaults>
</compile_context>

<pallas_src>
import jax
import jax.numpy as jnp
from jax.experimental import pallas as pl
from jax.experimental.pallas import tpu as pltpu


def se_kernel(x_ref, w1_ref, b1_ref, w2_ref, b2_ref, o_ref):
    # x_ref:  (C, TILE_L)   activation tile, native dtype, L on lanes
    # w1_ref: (M, C)        Conv1d #1 weight (kernel dim squeezed)
    # b1_ref: (M, 1)        f32
    # w2_ref: (C, M)        Conv1d #2 weight
    # b2_ref: (C, 1)        f32
    # o_ref:  (C, TILE_L)
    x = x_ref[...]
    h = jnp.dot(w1_ref[...], x, preferred_element_type=jnp.float32) + b1_ref[...]
    a = h * jax.nn.sigmoid(h)                                   # SiLU (f32)
    y = (
        jnp.dot(w2_ref[...], a.astype(w2_ref.dtype), preferred_element_type=jnp.float32)
        + b2_ref[...]
    )
    # Residual add on the f32 accumulator, then cast once at output precision.
    o_ref[...] = (y + x.astype(jnp.float32)).astype(o_ref.dtype)


def _choose_tile_l(L, max_tile_l):
    """Largest L-tile that (a) divides L and (b) is a lane-aligned multiple of 128,
    capped at max_tile_l. Falls back to the full L when L is small / indivisible."""
    if L <= max_tile_l:
        return L
    start = max_tile_l - (max_tile_l % 128)
    for t in range(start, 127, -128):
        if L % t == 0:
            return t
    return L  # indivisible by any 128-multiple tile: take the whole axis


def squeeze_excite(x, w1, b1, w2, b2, *, max_tile_l=1024):
    """x: (B, C, L); w1: (M, C); b1: (M,); w2: (C, M); b2: (C,). Returns (B, C, L)."""
    B, C, L = x.shape
    M = w1.shape[0]
    tile_l = _choose_tile_l(L, max_tile_l)
    grid = (B, L // tile_l)

    b1_r = b1.reshape(M, 1).astype(jnp.float32)
    b2_r = b2.reshape(C, 1).astype(jnp.float32)

    act_bytes = jnp.dtype(x.dtype).itemsize
    w_bytes = jnp.dtype(w1.dtype).itemsize
    cost = pl.CostEstimate(
        flops=4 * B * L * C * M,                       # two (C,M) matmuls over B*L
        transcendentals=B * L * M,                     # sigmoid in SiLU
        bytes_accessed=2 * B * C * L * act_bytes
        + (w1.size + w2.size) * w_bytes
        + (M + C) * 4,
    )

    return pl.pallas_call(
        se_kernel,
        out_shape=jax.ShapeDtypeStruct((B, C, L), x.dtype),
        grid=grid,
        in_specs=[
            pl.BlockSpec((None, C, tile_l), lambda b, l: (b, 0, l)),  # x tile
            pl.BlockSpec((M, C), lambda b, l: (0, 0)),                # w1 (resident)
            pl.BlockSpec((M, 1), lambda b, l: (0, 0)),                # b1 (resident)
            pl.BlockSpec((C, M), lambda b, l: (0, 0)),                # w2 (resident)
            pl.BlockSpec((C, 1), lambda b, l: (0, 0)),                # b2 (resident)
        ],
        out_specs=pl.BlockSpec((None, C, tile_l), lambda b, l: (b, 0, l)),
        input_output_aliases={0: 0},  # residual: x tile read precedes its write
        compiler_params=pltpu.CompilerParams(
            dimension_semantics=("parallel", "parallel"),
        ),
        cost_estimate=cost,
    )(x, w1, b1_r, w2, b2_r)


def reference(x, w1, b1, w2, b2):
    # Pure-JAX reference of the PyTorch forward (Conv1d k=1 == channel matmul).
    h = jnp.einsum("mc,bcl->bml", w1, x) + b1[None, :, None]
    a = h * jax.nn.sigmoid(h)
    y = jnp.einsum("cm,bml->bcl", w2, a) + b2[None, :, None]
    return y + x


if __name__ == "__main__":
    B, CH_IN, MID, L = 2, 4, 8, 16

    key = jax.random.PRNGKey(0)
    kx, kw1, kb1, kw2, kb2 = jax.random.split(key, 5)

    x = jax.random.normal(kx, (B, CH_IN, L), dtype=jnp.float32)
    # Conv1d weights have shape (out_ch, in_ch, 1); kernel dim squeezed here.
    w1 = jax.random.normal(kw1, (MID, CH_IN), dtype=jnp.float32) * 0.1
    b1 = jax.random.normal(kb1, (MID,), dtype=jnp.float32) * 0.1
    w2 = jax.random.normal(kw2, (CH_IN, MID), dtype=jnp.float32) * 0.1
    b2 = jax.random.normal(kb2, (CH_IN,), dtype=jnp.float32) * 0.1

    # Reference computed first (kernel output aliases x's buffer).
    ref = reference(x, w1, b1, w2, b2)

    out = squeeze_excite(x, w1, b1, w2, b2)
    out = jax.block_until_ready(out)

    assert out.shape == (B, CH_IN, L)
    assert jnp.allclose(out, ref, atol=1e-5, rtol=1e-5), "mismatch vs reference"

    print("KERNEL_OK")
</pallas_src>

<mosaic_0001>
module attributes {stable_mosaic.version = 11 : i64} {
  func.func @se_kernel(%arg0: i32, %arg1: i32, %arg2: memref<1x4x16xf32, #tpu.memory_space<vmem>>, %arg3: memref<8x4xf32, #tpu.memory_space<vmem>>, %arg4: memref<8x1xf32, #tpu.memory_space<vmem>>, %arg5: memref<4x8xf32, #tpu.memory_space<vmem>>, %arg6: memref<4x1xf32, #tpu.memory_space<vmem>>, %arg7: memref<1x4x16xf32, #tpu.memory_space<vmem>>) attributes {dimension_semantics = [#tpu.dimension_semantics<parallel>, #tpu.dimension_semantics<parallel>], iteration_bounds = array<i64: 2, 1>, scalar_prefetch = 0 : i64, scratch_operands = 0 : i64, tpu.core_type = #tpu.core_type<tc>, window_params = [{transform_indices = @transform_0, window_bounds = array<i64: 1, 4, 16>}, {pipeline_mode = #tpu.pipeline_mode<synchronous>, transform_indices = @transform_1, window_bounds = array<i64: 8, 4>}, {pipeline_mode = #tpu.pipeline_mode<synchronous>, transform_indices = @transform_2, window_bounds = array<i64: 8, 1>}, {pipeline_mode = #tpu.pipeline_mode<synchronous>, transform_indices = @transform_3, window_bounds = array<i64: 4, 8>}, {pipeline_mode = #tpu.pipeline_mode<synchronous>, transform_indices = @transform_4, window_bounds = array<i64: 4, 1>}, {transform_indices = @transform_5, window_bounds = array<i64: 1, 4, 16>}]} {
    %c0 = arith.constant 0 : index
    %c0_0 = arith.constant 0 : index
    %c0_1 = arith.constant 0 : index
    %0 = vector.load %arg2[%c0, %c0_0, %c0_1] : memref<1x4x16xf32, #tpu.memory_space<vmem>>, vector<1x4x16xf32>
    %1 = vector.shape_cast %0 : vector<1x4x16xf32> to vector<4x16xf32>
    %c0_2 = arith.constant 0 : index
    %c0_3 = arith.constant 0 : index
    %2 = vector.load %arg3[%c0_2, %c0_3] : memref<8x4xf32, #tpu.memory_space<vmem>>, vector<8x4xf32>
    %cst = arith.constant dense<0.000000e+00> : vector<8x16xf32>
    %3 = tpu.matmul %2, %1, %cst {dimension_numbers = #tpu.dot_dimension_numbers<[1], [0], [0], [1], [0, 0, 1, 1], [], []>} : vector<8x4xf32>, vector<4x16xf32>, vector<8x16xf32> -> vector<8x16xf32>
    %c0_4 = arith.constant 0 : index
    %c0_5 = arith.constant 0 : index
    %4 = vector.load %arg4[%c0_4, %c0_5] : memref<8x1xf32, #tpu.memory_space<vmem>>, vector<8x1xf32>
    %5 = vector.broadcast %4 : vector<8x1xf32> to vector<8x16xf32>
    %6 = arith.addf %3, %5 : vector<8x16xf32>
    %7 = arith.negf %6 : vector<8x16xf32>
    %8 = math.exp %7 : vector<8x16xf32>
    %cst_6 = arith.constant 1.000000e+00 : f32
    %9 = vector.broadcast %cst_6 : f32 to vector<8x16xf32>
    %10 = arith.addf %9, %8 : vector<8x16xf32>
    %11 = arith.divf %9, %10 : vector<8x16xf32>
    %12 = arith.mulf %6, %11 : vector<8x16xf32>
    %c0_7 = arith.constant 0 : index
    %c0_8 = arith.constant 0 : index
    %13 = vector.load %arg5[%c0_7, %c0_8] : memref<4x8xf32, #tpu.memory_space<vmem>>, vector<4x8xf32>
    %cst_9 = arith.constant dense<0.000000e+00> : vector<4x16xf32>
    %14 = tpu.matmul %13, %12, %cst_9 {dimension_numbers = #tpu.dot_dimension_numbers<[1], [0], [0], [1], [0, 0, 1, 1], [], []>} : vector<4x8xf32>, vector<8x16xf32>, vector<4x16xf32> -> vector<4x16xf32>
    %c0_10 = arith.constant 0 : index
    %c0_11 = arith.constant 0 : index
    %15 = vector.load %arg6[%c0_10, %c0_11] : memref<4x1xf32, #tpu.memory_space<vmem>>, vector<4x1xf32>
    %16 = vector.broadcast %15 : vector<4x1xf32> to vector<4x16xf32>
    %17 = arith.addf %14, %16 : vector<4x16xf32>
    %18 = arith.addf %17, %1 : vector<4x16xf32>
    %c0_12 = arith.constant 0 : index
    %c0_13 = arith.constant 0 : index
    %c0_14 = arith.constant 0 : index
    %19 = vector.load %arg7[%c0_12, %c0_13, %c0_14] : memref<1x4x16xf32, #tpu.memory_space<vmem>>, vector<1x4x16xf32>
    %20 = vector.shape_cast %19 : vector<1x4x16xf32> to vector<4x16xf32>
    %21 = vector.shape_cast %18 : vector<4x16xf32> to vector<1x4x16xf32>
    tpu.vector_store %arg7[%c0_12, %c0_13, %c0_14], %21 {strides = array<i32>} : memref<1x4x16xf32, #tpu.memory_space<vmem>>, vector<1x4x16xf32>,
    return
  }
  func.func @transform_0(%arg0: i32, %arg1: i32) -> (i32, i32, i32) {
    %c0_i32 = arith.constant 0 : i32
    %c0_i32_0 = arith.constant 0 : i32
    return %arg0, %c0_i32, %arg1 : i32, i32, i32
  }
  func.func @transform_1(%arg0: i32, %arg1: i32) -> (i32, i32) {
    %c0_i32 = arith.constant 0 : i32
    %c0_i32_0 = arith.constant 0 : i32
    %c0_i32_1 = arith.constant 0 : i32
    return %c0_i32, %c0_i32_0 : i32, i32
  }
  func.func @transform_2(%arg0: i32, %arg1: i32) -> (i32, i32) {
    %c0_i32 = arith.constant 0 : i32
    %c0_i32_0 = arith.constant 0 : i32
    %c0_i32_1 = arith.constant 0 : i32
    return %c0_i32, %c0_i32_0 : i32, i32
  }
  func.func @transform_3(%arg0: i32, %arg1: i32) -> (i32, i32) {
    %c0_i32 = arith.constant 0 : i32
    %c0_i32_0 = arith.constant 0 : i32
    %c0_i32_1 = arith.constant 0 : i32
    return %c0_i32, %c0_i32_0 : i32, i32
  }
  func.func @transform_4(%arg0: i32, %arg1: i32) -> (i32, i32) {
    %c0_i32 = arith.constant 0 : i32
    %c0_i32_0 = arith.constant 0 : i32
    %c0_i32_1 = arith.constant 0 : i32
    return %c0_i32, %c0_i32_0 : i32, i32
  }
  func.func @transform_5(%arg0: i32, %arg1: i32) -> (i32, i32, i32) {
    %c0_i32 = arith.constant 0 : i32
    %c0_i32_0 = arith.constant 0 : i32
    return %arg0, %c0_i32, %arg1 : i32, i32, i32
  }
}

</mosaic_0001>

<llo_original>
// kernel: tpu_custom_call.1
$region0: #{tpu_custom_call.1}
  #allocation0 [shape = 'u32[]', space=smem, size = 0x4, offset = 0x4, fixed_abs, tag = 'smem constant byte address 0x4 - core index']
  #allocation1 [shape = 'u32[72,128]{1,0:T(1,128)}', space=vmem, size = 0x9000, scoped, tag = 'internal scratch']
  %s0 = inlined_call_operand.hbm [shape: f32[2,4,16], index: 0, kind: input, shape index: {}, may-alias: {0,5}]
  %s1 = inlined_call_operand.vmem [shape: f32[8,4], index: 1, kind: input, shape index: {}]
  %s2 = inlined_call_operand.vmem [shape: f32[8,1], index: 2, kind: input, shape index: {}]
  %s3 = inlined_call_operand.vmem [shape: f32[4,8], index: 3, kind: input, shape index: {}]
  %s4 = inlined_call_operand.vmem [shape: f32[4,1], index: 4, kind: input, shape index: {}]
  %s5 = inlined_call_operand.hbm [shape: f32[2,4,16], index: 5, kind: output, shape index: {}, may-alias: {0,5}]
  %s6 = sld [smem:[#allocation0]]
  $region57: #{tpu_custom_call.1} parent=0
    _
  %s8 = ssub.s32 1, %s6
  %s9 = scalar_select 0, %s8, %s6
  $region1: #{tpu_custom_call.1} parent=0
    #allocation2 [shape = 'u8[4096]{0}', space=vmem, size = 0x1000, scoped, tag = 'input window, operand 0']
    #allocation3 [shape = 's32[2]{0}', space=sflag, size = 0x8, scoped, tag = 'scoped memory for tpu_custom_call.1']
    #allocation4 [shape = 's32[2]{0}', space=sflag, size = 0x8, scoped, tag = 'scoped memory for tpu_custom_call.1']
    #allocation5 [shape = 'u8[4096]{0}', space=vmem, size = 0x1000, scoped, tag = 'output window, operand 0']
    %10 = vsyncpa [#allocation3], 0
    %s11 = scalar_lea.sflag [#allocation3], 1
    %12 = vsyncpa %s11, 0
    %13 = vsyncpa [#allocation4], 0
    %s14 = scalar_lea.sflag [#allocation4], 1
    %15 = vsyncpa %s14, 0
    loop: start=0, step=1, limit=4
    $region2: #{tpu_custom_call.1} parent=1 // loop_pre_header
      _
    $region3: #{tpu_custom_call.1} parent=1 // loop_header
      %s17 = sphi 0, %s21
      %p18 = scmp.ge.s32.totalorder %s17, 4
      %s24 = sphi 0, %s36
      %s25 = sphi 0, %s32
      %s26 = sphi 0, %s24
      %s27 = sphi 0, %s25
      %s28 = sphi 0, %s26
      %s29 = sphi 0, %s27
      %s41 = sphi 0, %s43
      %s44 = sphi 0, %s41
      %s45 = sphi 0, %s44
      %s61 = sphi 0, %s45
      %s65 = sphi 0, %s65
      %s67 = sphi 0, %s65
      %s68 = sphi 0, %s67
      %s82 = sphi 0, %s68
      %s86 = sphi 0, %s86
      %s88 = sphi 0, %s86
      %s89 = sphi 0, %s88
      %s103 = sphi 0, %s89
      %s107 = sphi 0, %s107
      %s109 = sphi 0, %s107
      %s110 = sphi 0, %s109
      %s124 = sphi 0, %s110
      %s128 = sphi 0, %s128
      %s130 = sphi 0, %s128
      %s131 = sphi 0, %s130
      %s145 = sphi 0, %s131
      %s153 = sphi 0, %s155
      %s156 = sphi 0, %s153
      %s157 = sphi 0, %s156
      %s173 = sphi 0, %s157
    $region4: #{tpu_custom_call.1} parent=1 // loop_header_branch
      %20 = sbr.rel (%p18) target = $region8
    $region5: #{tpu_custom_call.1} parent=1 // loop_body
      %s22 = ssub.s32 %s17, 1
      %s23 = ssub.s32 %s17, 2
      %s30 = sadd.s32 1, %s25
      %p31 = scmp.ge.s32.totalorder %s30, 1
      %s32 = scalar_select %p31, 0, %s30
      %s33 = sadd.s32 1, %s24
      %s34 = scalar_select %p31, %s33, %s24
      %p35 = scmp.ge.s32.totalorder %s34, 2
      %s36 = scalar_select %p35, 0, %s34
      %s37 = ssub.s32 %s24, %s36
      %s38 = ssub.s32 %s25, %s32
      %s39 = sor.u32 %s37, %s38
      %p40 = scmp.eq.s32.totalorder %s39, 0
      %s42 = sadd.s32 %s41, 1
      %s43 = scalar_select %p40, %s41, %s42
      %p46 = pneg %p40
      %p47 = scmp.eq.s32.totalorder %s17, 1
      %p48 = por %p46, %p47
      %p49 = scmp.ne.s32.totalorder %s41, %s44
      %p50 = scmp.eq.s32.totalorder %s17, 0
      %p51 = por %p49, %p50
      %p52 = scmp.ne.s32.totalorder %s41, %s44
      %p53 = scmp.eq.s32.totalorder %s22, 1
      %p54 = por %p52, %p53
      %p55 = scmp.ne.s32.totalorder %s44, %s45
      %p56 = scmp.eq.s32.totalorder %s22, 0
      %p57 = por %p55, %p56
      %p58 = scmp.ne.s32.totalorder %s44, %s45
      %p59 = scmp.eq.s32.totalorder %s23, 1
      %p60 = por %p58, %p59
      %p62 = scmp.ne.s32.totalorder %s45, %s61
      %p63 = scmp.eq.s32.totalorder %s23, 0
      %p64 = por %p62, %p63
      %s66 = sadd.s32 %s65, 1
      %p69 = scmp.eq.s32.totalorder %s17, 1
      %p70 = scmp.ne.s32.totalorder %s65, %s67
      %p71 = scmp.eq.s32.totalorder %s17, 0
      %p72 = por %p70, %p71
      %p73 = scmp.ne.s32.totalorder %s65, %s67
      %p74 = scmp.eq.s32.totalorder %s22, 1
      %p75 = por %p73, %p74
      %p76 = scmp.ne.s32.totalorder %s67, %s68
      %p77 = scmp.eq.s32.totalorder %s22, 0
      %p78 = por %p76, %p77
      %p79 = scmp.ne.s32.totalorder %s67, %s68
      %p80 = scmp.eq.s32.totalorder %s23, 1
      %p81 = por %p79, %p80
      %p83 = scmp.ne.s32.totalorder %s68, %s82
      %p84 = scmp.eq.s32.totalorder %s23, 0
      %p85 = por %p83, %p84
      %s87 = sadd.s32 %s86, 1
      %p90 = scmp.eq.s32.totalorder %s17, 1
      %p91 = scmp.ne.s32.totalorder %s86, %s88
      %p92 = scmp.eq.s32.totalorder %s17, 0
      %p93 = por %p91, %p92
      %p94 = scmp.ne.s32.totalorder %s86, %s88
      %p95 = scmp.eq.s32.totalorder %s22, 1
      %p96 = por %p94, %p95
      %p97 = scmp.ne.s32.totalorder %s88, %s89
      %p98 = scmp.eq.s32.totalorder %s22, 0
      %p99 = por %p97, %p98
      %p100 = scmp.ne.s32.totalorder %s88, %s89
      %p101 = scmp.eq.s32.totalorder %s23, 1
      %p102 = por %p100, %p101
      %p104 = scmp.ne.s32.totalorder %s89, %s103
      %p105 = scmp.eq.s32.totalorder %s23, 0
      %p106 = por %p104, %p105
      %s108 = sadd.s32 %s107, 1
      %p111 = scmp.eq.s32.totalorder %s17, 1
      %p112 = scmp.ne.s32.totalorder %s107, %s109
      %p113 = scmp.eq.s32.totalorder %s17, 0
      %p114 = por %p112, %p113
      %p115 = scmp.ne.s32.totalorder %s107, %s109
      %p116 = scmp.eq.s32.totalorder %s22, 1
      %p117 = por %p115, %p116
      %p118 = scmp.ne.s32.totalorder %s109, %s110
      %p119 = scmp.eq.s32.totalorder %s22, 0
      %p120 = por %p118, %p119
      %p121 = scmp.ne.s32.totalorder %s109, %s110
      %p122 = scmp.eq.s32.totalorder %s23, 1
      %p123 = por %p121, %p122
      %p125 = scmp.ne.s32.totalorder %s110, %s124
      %p126 = scmp.eq.s32.totalorder %s23, 0
      %p127 = por %p125, %p126
      %s129 = sadd.s32 %s128, 1
      %p132 = scmp.eq.s32.totalorder %s17, 1
      %p133 = scmp.ne.s32.totalorder %s128, %s130
      %p134 = scmp.eq.s32.totalorder %s17, 0
      %p135 = por %p133, %p134
      %p136 = scmp.ne.s32.totalorder %s128, %s130
      %p137 = scmp.eq.s32.totalorder %s22, 1
      %p138 = por %p136, %p137
      %p139 = scmp.ne.s32.totalorder %s130, %s131
      %p140 = scmp.eq.s32.totalorder %s22, 0
      %p141 = por %p139, %p140
      %p142 = scmp.ne.s32.totalorder %s130, %s131
      %p143 = scmp.eq.s32.totalorder %s23, 1
      %p144 = por %p142, %p143
      %p146 = scmp.ne.s32.totalorder %s131, %s145
      %p147 = scmp.eq.s32.totalorder %s23, 0
      %p148 = por %p146, %p147
      %s149 = ssub.s32 %s24, %s36
      %s150 = ssub.s32 %s25, %s32
      %s151 = sor.u32 %s149, %s150
      %p152 = scmp.eq.s32.totalorder %s151, 0
      %s154 = sadd.s32 %s153, 1
      %s155 = scalar_select %p152, %s153, %s154
      %p158 = pneg %p152
      %p159 = scmp.eq.s32.totalorder %s17, 1
      %p160 = por %p158, %p159
      %p161 = scmp.ne.s32.totalorder %s153, %s156
      %p162 = scmp.eq.s32.totalorder %s17, 0
      %p163 = por %p161, %p162
      %p164 = scmp.ne.s32.totalorder %s153, %s156
      %p165 = scmp.eq.s32.totalorder %s22, 1
      %p166 = por %p164, %p165
      %p167 = scmp.ne.s32.totalorder %s156, %s157
      %p168 = scmp.eq.s32.totalorder %s22, 0
      %p169 = por %p167, %p168
      %p170 = scmp.ne.s32.totalorder %s156, %s157
      %p171 = scmp.eq.s32.totalorder %s23, 1
      %p172 = por %p170, %p171
      %p174 = scmp.ne.s32.totalorder %s157, %s173
      %p175 = scmp.eq.s32.totalorder %s23, 0
      %p176 = por %p174, %p175
      %p177 = scmp.le.s32.totalorder 1, %s17
      %p178 = scmp.lt.s32.totalorder %s17, 3
      %p179 = pnand %p177, %p178
      %p180 = pneg %p179
      // Predicated region
      $region9: #{tpu_custom_call.1} parent=5 // pred_check
        _
      $region10: #{tpu_custom_call.1} parent=5 // pred_check_branch
        %182 = sbr.rel (%p179) target = $region12
      $region11: #{tpu_custom_call.1} parent=5 // pred_region
        %s183 = ssub.s32 %s17, 1
        // Predicated region
        $region13: #{tpu_custom_call.1} parent=11 // pred_check
          %p184 = pneg %p78
        $region14: #{tpu_custom_call.1} parent=11 // pred_check_branch
          %186 = sbr.rel (%p184) target = $region16
        $region15: #{tpu_custom_call.1} parent=11 // pred_region
          _
        $region16: #{tpu_custom_call.1} parent=11 // pred_fallthru
          _
        // Predicated region
        $region17: #{tpu_custom_call.1} parent=11 // pred_check
          %p187 = pneg %p99
        $region18: #{tpu_custom_call.1} parent=11 // pred_check_branch
          %189 = sbr.rel (%p187) target = $region20
        $region19: #{tpu_custom_call.1} parent=11 // pred_region
          _
        $region20: #{tpu_custom_call.1} parent=11 // pred_fallthru
          _
        // Predicated region
        $region21: #{tpu_custom_call.1} parent=11 // pred_check
          %p190 = pneg %p120
        $region22: #{tpu_custom_call.1} parent=11 // pred_check_branch
          %192 = sbr.rel (%p190) target = $region24
        $region23: #{tpu_custom_call.1} parent=11 // pred_region
          _
        $region24: #{tpu_custom_call.1} parent=11 // pred_fallthru
          _
        // Predicated region
        $region25: #{tpu_custom_call.1} parent=11 // pred_check
          %p193 = pneg %p141
        $region26: #{tpu_custom_call.1} parent=11 // pred_check_branch
          %195 = sbr.rel (%p193) target = $region28
        $region27: #{tpu_custom_call.1} parent=11 // pred_region
          _
        $region28: #{tpu_custom_call.1} parent=11 // pred_fallthru
          _
      $region12: #{tpu_custom_call.1} parent=5 // pred_fallthru
        _
      %p196 = scmp.lt.s32.totalorder %s17, 2
      // Predicated region
      $region29: #{tpu_custom_call.1} parent=5 // pred_check
        %p197 = pneg %p196
      $region30: #{tpu_custom_call.1} parent=5 // pred_check_branch
        %199 = sbr.rel (%p197) target = $region32
      $region31: #{tpu_custom_call.1} parent=5 // pred_region
        // Predicated region
        $region33: #{tpu_custom_call.1} parent=31 // pred_check
          %p200 = pneg %p51
        $region34: #{tpu_custom_call.1} parent=31 // pred_check_branch
          %202 = sbr.rel (%p200) target = $region36
        $region35: #{tpu_custom_call.1} parent=31 // pred_region
          %s203 = sand.u32 %s41, 1
          %s204 = scalar_lea.sflag [#allocation3], %s203
          %s205 = sand.u32 %s41, 1
          %s206 = smul.addr %s205, 4
          %s207 = scalar_lea.vmem [#allocation2], %s206
          %209 = vsyncadd %s204, 0
          %s210 = sadd.s32 %s25, %s24
          %s211 = smul.addr %s210, 4
          %s212 = scalar_lea.hbm %s0, %s211
          %s214 = sshll.u32 %s212, 4
          %s215 = int_to_ptr.hbm [resolvable:$true] %s214
          %s216 = sshll.u32 %s207, 4
          %s217 = int_to_ptr.vmem [resolvable:$true] %s216
          %219 = dma.hbm_to_vmem [thread:$0]  %s215, 64, %s217, %s204
        $region36: #{tpu_custom_call.1} parent=31 // pred_fallthru
          _
      $region32: #{tpu_custom_call.1} parent=5 // pred_fallthru
        _
      %p220 = scmp.le.s32.totalorder 1, %s17
      %p221 = scmp.lt.s32.totalorder %s17, 3
      %p222 = pnand %p220, %p221
      %p223 = pneg %p222
      // Predicated region
      $region37: #{tpu_custom_call.1} parent=5 // pred_check
        _
      $region38: #{tpu_custom_call.1} parent=5 // pred_check_branch
        %225 = sbr.rel (%p222) target = $region40
      $region39: #{tpu_custom_call.1} parent=5 // pred_region
        %s226 = ssub.s32 %s17, 1
        %s227 = sand.u32 %s44, 1
        %s228 = scalar_lea.sflag [#allocation3], %s227
        %s229 = sand.u32 %s44, 1
        %s230 = smul.addr %s229, 4
        %s231 = scalar_lea.vmem [#allocation2], %s230
        // Predicated region
        $region41: #{tpu_custom_call.1} parent=39 // pred_check
          %p232 = pneg %p57
        $region42: #{tpu_custom_call.1} parent=39 // pred_check_branch
          %234 = sbr.rel (%p232) target = $region44
        $region43: #{tpu_custom_call.1} parent=39 // pred_region
          %236 = dma.done %s228, 64
        $region44: #{tpu_custom_call.1} parent=39 // pred_fallthru
          _
        %s237 = sand.u32 %s44, 1
        %s238 = scalar_lea.sflag [#allocation3], %s237
        %s239 = sand.u32 %s44, 1
        %s240 = smul.addr %s239, 4
        %s241 = scalar_lea.vmem [#allocation2], %s240
        %p242 = pneg %p57
        %p243 = pneg %p54
        %p244 = pneg %p78
        %p245 = pneg %p75
        %p246 = pneg %p99
        %p247 = pneg %p96
        %p248 = pneg %p120
        %p249 = pneg %p117
        %p250 = pneg %p141
        %p251 = pneg %p138
        %p252 = pneg %p169
        %p253 = pneg %p166
        %s254 = sand.u32 %s156, 1
        %s255 = scalar_lea.sflag [#allocation4], %s254
        %s256 = sand.u32 %s156, 1
        %s257 = smul.addr %s256, 4
        %s258 = scalar_lea.vmem [#allocation5], %s257
        %v259 = vld [vmem:[%s231] sm:$0xf]
        %v260 = vld [vmem:[%s1] sm:$0xff]
        %v261 = vld [vmem:[%s2] sm:$0xff]
        %263 = vset.pattern.permute.xlu0 0
        %264 = vperm.xlu0 %263, %v261
        %v265 = vpop.permute.xlu0 %264
        %vm267 = vcmask 31744
        %v269 = vsel %vm267, %v260, 0
        %vm271 = vcmask 1043456
        %v273 = vsel %vm271, %v259, 0
        %275 = vmatpush.msra.mxu0 0.0
        %276 = vmatpush.msra.mxu0 0.0
        %277 = vmatpush.msra.mxu0 0.0
        %278 = vmatpush.msra.mxu0 0.0
        %279 = vmatpush.msra.mxu0 0.0
        %280 = vmatpush.msra.mxu0 0.0
        %281 = vmatpush.msra.mxu0 0.0
        %282 = vmatpush.msra.mxu0 0.0
        %283 = vmatpush.msra.mxu0 0.0
        %284 = vmatpush.msra.mxu0 0.0
        %285 = vmatpush.msra.mxu0 0.0
        %286 = vmatpush.msra.mxu0 0.0
        %287 = vmatpush.msra.mxu0 0.0
        %288 = vmatpush.msra.mxu0 0.0
        %289 = vmatpush.msra.mxu0 0.0
        %290 = vmatpush.msra.mxu0 %v273
        %291 = vmatmul.f32.gmra.mxu0 %v269
        %v292 = vpop.f32.mrf.mxu0
        %v293 = vadd.f32 %v265, %v292
        %294 = vdwg.mxu0
        %v295 = vxor.u32 %v293, 2147483648
        %v296 = vmul.f32 %v295, 1.442695
        %v297 = vpow.pop %v296
        %v298 = vadd.f32 %v297, 1.0
        %v299 = vrcp.pop %v298
        %v300 = vmul.f32 %v298, %v299
        %v301 = vsub.f32 1.0, %v300
        %v302 = vmul.f32 %v299, %v301
        %v303 = vadd.f32 %v299, %v302
        %vm304 = vweird.f32 %v298
        %vm305 = vweird.f32 %v299
        %vm306 = vmor %vm304, %vm305
        %v307 = vsel %vm306, %v299, %v303
        %v308 = vand.u32 2147483647, %v298
        %vm309 = vcmp.eq.f32.partialorder %v308, 8.507059e+37
        %v310 = vand.u32 %v298, 2147483648
        %v311 = vor.u32 1.1754944e-38, %v310
        %v312 = vsel %vm309, %v311, %v307
        %v313 = vmul.f32 1.0, %v312
        %v314 = vmul.f32 %v293, %v313
        %v315 = vld [vmem:[%s3] sm:$0xf]
        %v316 = vld [vmem:[%s4] sm:$0xf]
        %318 = vset.pattern.permute.xlu0 0
        %319 = vperm.xlu0 %318, %v316
        %v320 = vpop.permute.xlu0 %319
        %vm322 = vcmask 64512
        %v324 = vsel %vm322, %v315, 0
        %326 = vmatpush.msra.mxu0 0.0
        %327 = vmatpush.msra.mxu0 0.0
        %328 = vmatpush.msra.mxu0 0.0
        %329 = vmatpush.msra.mxu0 0.0
        %330 = vmatpush.msra.mxu0 0.0
        %331 = vmatpush.msra.mxu0 0.0
        %332 = vmatpush.msra.mxu0 0.0
        %333 = vmatpush.msra.mxu0 0.0
        %334 = vmatpush.msra.mxu0 0.0
        %335 = vmatpush.msra.mxu0 0.0
        %336 = vmatpush.msra.mxu0 0.0
        %337 = vmatpush.msra.mxu0 0.0
        %338 = vmatpush.msra.mxu0 0.0
        %339 = vmatpush.msra.mxu0 0.0
        %340 = vmatpush.msra.mxu0 0.0
        %341 = vmatpush.msra.mxu0 %v314
        %342 = vmatmul.f32.gmra.mxu0 %v324
        %v343 = vpop.f32.mrf.mxu0
        %v344 = vadd.f32 %v320, %v343
        %345 = vdwg.mxu0
        %v346 = vadd.f32 %v344, %v259
        %vm347 = vcmask 125952
        %348 = vst.msk [vmem:[%s258] sm:$0xf] %vm347, %v346
        %s349 = sand.u32 %s156, 1
        %s350 = scalar_lea.sflag [#allocation4], %s349
        %s351 = sand.u32 %s156, 1
        %s352 = smul.addr %s351, 4
        %s353 = scalar_lea.vmem [#allocation5], %s352
        // Predicated region
        $region45: #{tpu_custom_call.1} parent=39 // pred_check
          %p354 = pneg %p166
        $region46: #{tpu_custom_call.1} parent=39 // pred_check_branch
          %356 = sbr.rel (%p354) target = $region48
        $region47: #{tpu_custom_call.1} parent=39 // pred_region
          %358 = vsyncadd %s350, 0
          %s359 = sadd.s32 %s27, %s26
          %s360 = smul.addr %s359, 4
          %s361 = scalar_lea.hbm %s5, %s360
          %s363 = sshll.u32 %s353, 4
          %s364 = int_to_ptr.vmem [resolvable:$true] %s363
          %s365 = sshll.u32 %s361, 4
          %s366 = int_to_ptr.hbm [resolvable:$true] %s365
          %368 = dma.vmem_to_hbm [thread:$0]  %s364, 64, %s366, %s350
        $region48: #{tpu_custom_call.1} parent=39 // pred_fallthru
          _
      $region40: #{tpu_custom_call.1} parent=5 // pred_fallthru
        _
      %p369 = scmp.le.s32.totalorder 2, %s17
      // Predicated region
      $region49: #{tpu_custom_call.1} parent=5 // pred_check
        %p370 = pneg %p369
      $region50: #{tpu_custom_call.1} parent=5 // pred_check_branch
        %372 = sbr.rel (%p370) target = $region52
      $region51: #{tpu_custom_call.1} parent=5 // pred_region
        %s373 = ssub.s32 %s17, 2
        // Predicated region
        $region53: #{tpu_custom_call.1} parent=51 // pred_check
          %p374 = pneg %p172
        $region54: #{tpu_custom_call.1} parent=51 // pred_check_branch
          %376 = sbr.rel (%p374) target = $region56
        $region55: #{tpu_custom_call.1} parent=51 // pred_region
          %s377 = sand.u32 %s157, 1
          %s378 = scalar_lea.sflag [#allocation4], %s377
          %s379 = sand.u32 %s157, 1
          %s380 = smul.addr %s379, 4
          %s381 = scalar_lea.vmem [#allocation5], %s380
          %383 = dma.done %s378, 64
        $region56: #{tpu_custom_call.1} parent=51 // pred_fallthru
          _
      $region52: #{tpu_custom_call.1} parent=5 // pred_fallthru
        _
    $region6: #{tpu_custom_call.1} parent=1 // loop_footer
      %s21 = sadd.s32 1, %s17
    $region7: #{tpu_custom_call.1} parent=1 // loop_footer_branch
      %16 = sbr.rel target = $region3
    $region8: #{tpu_custom_call.1} parent=1 // loop_exit
      _
    %384 = vsyncpa [#allocation3], 1
    %s385 = scalar_lea.sflag [#allocation3], 1
    %386 = vsyncpa %s385, 1
    %387 = vsyncpa [#allocation4], 1
    %s388 = scalar_lea.sflag [#allocation4], 1
    %389 = vsyncpa %s388, 1

</llo_original>
